<compile_context>
chip_gen: v5e
topology: v5e:2x2
jax: 0.10.0
libtpu: 0.0.40
codegen_flags: <defaults>
</compile_context>

<pallas_src>
import jax
import jax.numpy as jnp
from jax.experimental import pallas as pl
from jax.experimental.pallas import tpu as pltpu


def _to_rgb_kernel(x_ref, w_ref, b_ref, o_ref):
    # x_ref: (Cin, R, 128)  VMEM -- pixel tile, dense over sublanes+lanes
    # w_ref: (Cout, Cin)    SMEM -- 1x1 conv weights (f32 scalars)
    # b_ref: (Cout,)        SMEM -- bias (f32 scalars)
    # o_ref: (Cout, R, 128) VMEM -- output tile
    cout, cin = w_ref.shape
    cdt = x_ref.dtype                      # keep bf16 math in bf16; f32 stays f32
    x = x_ref[...]                         # (Cin, R, 128)

    for o in range(cout):                  # Cout == 3: tiny static loop
        # Channel contraction as broadcast FMAs on the VPU (no MXU needed).
        acc = x[0] * w_ref[o, 0].astype(cdt)
        for c in range(1, cin):
            acc = acc + x[c] * w_ref[o, c].astype(cdt)
        z = acc + b_ref[o].astype(cdt)
        # Exact sigmoid with a single EUP transcendental:
        # sigmoid(z) = 0.5 * tanh(0.5 * z) + 0.5
        o_ref[o] = (0.5 * jnp.tanh(0.5 * z) + 0.5).astype(o_ref.dtype)


def to_rgb(x_nchw, weight, bias, *, target_pixels_per_step=65536):
    """x_nchw: [B, Cin, H, W]; weight: [Cout, Cin, 1, 1]; bias: [Cout] -> [B, Cout, H, W]."""
    B, Cin, H, W = x_nchw.shape
    Cout = weight.shape[0]
    HW = H * W
    dt = x_nchw.dtype
    itemsize = jnp.dtype(dt).itemsize

    # Pixel axis packed as rows of 128 lanes.
    rows_total = -(-HW // 128)                               # ceil(HW / 128)
    target_rows = max(8, (target_pixels_per_step // 128 // 8) * 8)

    if rows_total <= target_rows:
        # Whole pixel axis in one step (full-extent block is always legal).
        rows_step, rows_pad = rows_total, rows_total
    else:
        # Prefer a multiple-of-8 divisor of rows_total -> no extra padding.
        rows_step = target_rows
        rows_pad = -(-rows_total // rows_step) * rows_step
        for r in range(target_rows, 7, -8):
            if rows_total % r == 0:
                rows_step, rows_pad = r, rows_total
                break

    HW_pad = rows_pad * 128
    x_flat = x_nchw.reshape(B, Cin, HW)                      # free view (H,W contiguous)
    if HW_pad != HW:
        x_flat = jnp.pad(x_flat, ((0, 0), (0, 0), (0, HW_pad - HW)))
    x_rows = x_flat.reshape(B, Cin, rows_pad, 128)

    w_mat = weight.reshape(Cout, Cin).astype(jnp.float32)
    b_vec = bias.reshape(Cout).astype(jnp.float32)

    grid = (B, rows_pad // rows_step)

    cost = pl.CostEstimate(
        flops=2 * B * Cout * Cin * HW_pad,
        transcendentals=B * Cout * HW_pad,
        bytes_accessed=B * (Cin + Cout) * HW_pad * itemsize,
    )

    out_rows = pl.pallas_call(
        _to_rgb_kernel,
        out_shape=jax.ShapeDtypeStruct((B, Cout, rows_pad, 128), dt),
        grid_spec=pltpu.PrefetchScalarGridSpec(
            num_scalar_prefetch=0,
            grid=grid,
            in_specs=[
                # pixel tile: batch dim squeezed, pixels dense over (R, 128)
                pl.BlockSpec((None, Cin, rows_step, 128),
                             lambda b, j: (b, 0, j, 0)),
                # tiny weights / bias live in SMEM as scalars
                pl.BlockSpec(memory_space=pltpu.MemorySpace.SMEM),
                pl.BlockSpec(memory_space=pltpu.MemorySpace.SMEM),
            ],
            out_specs=pl.BlockSpec((None, Cout, rows_step, 128),
                                   lambda b, j: (b, 0, j, 0)),
        ),
        compiler_params=pltpu.CompilerParams(
            dimension_semantics=("parallel", "parallel"),
            vmem_limit_bytes=32 * 1024 * 1024),
        cost_estimate=cost,
    )(x_rows, w_mat, b_vec)

    out_flat = out_rows.reshape(B, Cout, HW_pad)
    if HW_pad != HW:
        out_flat = out_flat[:, :, :HW]
    return out_flat.reshape(B, Cout, H, W)


if __name__ == "__main__":
    key = jax.random.PRNGKey(0)
    k_x, k_w, k_b = jax.random.split(key, 3)

    B, Cin, H, W = 2, 4, 16, 16
    Cout = 3

    # Deterministic "parameters" (same shapes as nn.Conv2d(in, 3, kernel_size=1)).
    x = jax.random.normal(k_x, (B, Cin, H, W), dtype=jnp.float32)
    bound = 1.0 / (Cin ** 0.5)
    weight = jax.random.uniform(k_w, (Cout, Cin, 1, 1), minval=-bound, maxval=bound,
                                dtype=jnp.float32)
    bias = jax.random.uniform(k_b, (Cout,), minval=-bound, maxval=bound,
                              dtype=jnp.float32)

    out = to_rgb(x, weight, bias)
    out = jax.block_until_ready(out)

    # Reference in plain JAX (1x1 conv == per-pixel matmul, then sigmoid).
    ref = jax.nn.sigmoid(
        jnp.einsum("bchw,oc->bohw", x, weight.reshape(Cout, Cin))
        + bias[None, :, None, None])

    assert out.shape == (B, Cout, H, W)
    assert jnp.allclose(out, ref, atol=1e-4, rtol=1e-4)

    print("KERNEL_OK")
</pallas_src>

<mosaic_0001>
module attributes {stable_mosaic.version = 11 : i64} {
  func.func @_to_rgb_kernel(%arg0: i32, %arg1: i32, %arg2: memref<1x4x2x128xf32, #tpu.memory_space<vmem>>, %arg3: memref<3x4xf32, #tpu.memory_space<smem>>, %arg4: memref<3xf32, #tpu.memory_space<smem>>, %arg5: memref<1x3x2x128xf32, #tpu.memory_space<vmem>>) attributes {dimension_semantics = [#tpu.dimension_semantics<parallel>, #tpu.dimension_semantics<parallel>], iteration_bounds = array<i64: 2, 1>, scalar_prefetch = 0 : i64, scratch_operands = 0 : i64, tpu.core_type = #tpu.core_type<tc>, window_params = [{transform_indices = @transform_0, window_bounds = array<i64: 1, 4, 2, 128>}, {transform_indices = @transform_1, window_bounds = array<i64: 3, 4>}, {transform_indices = @transform_2, window_bounds = array<i64: 3>}, {transform_indices = @transform_3, window_bounds = array<i64: 1, 3, 2, 128>}]} {
    %c0 = arith.constant 0 : index
    %c0_0 = arith.constant 0 : index
    %c0_1 = arith.constant 0 : index
    %c0_2 = arith.constant 0 : index
    %0 = vector.load %arg2[%c0, %c0_0, %c0_1, %c0_2] : memref<1x4x2x128xf32, #tpu.memory_space<vmem>>, vector<1x4x2x128xf32>
    %1 = vector.shape_cast %0 : vector<1x4x2x128xf32> to vector<4x2x128xf32>
    %2 = vector.extract_strided_slice %1 {offsets = [0, 0, 0], sizes = [1, 2, 128], strides = [1, 1, 1]} : vector<4x2x128xf32> to vector<1x2x128xf32>
    %3 = vector.shape_cast %2 : vector<1x2x128xf32> to vector<2x128xf32>
    %c0_3 = arith.constant 0 : index
    %c0_4 = arith.constant 0 : index
    %4 = memref.load %arg3[%c0_3, %c0_4] : memref<3x4xf32, #tpu.memory_space<smem>>
    %5 = vector.broadcast %4 : f32 to vector<2x128xf32>
    %6 = arith.mulf %3, %5 : vector<2x128xf32>
    %7 = vector.extract_strided_slice %1 {offsets = [1, 0, 0], sizes = [1, 2, 128], strides = [1, 1, 1]} : vector<4x2x128xf32> to vector<1x2x128xf32>
    %8 = vector.shape_cast %7 : vector<1x2x128xf32> to vector<2x128xf32>
    %c0_5 = arith.constant 0 : index
    %c1 = arith.constant 1 : index
    %9 = memref.load %arg3[%c0_5, %c1] : memref<3x4xf32, #tpu.memory_space<smem>>
    %10 = vector.broadcast %9 : f32 to vector<2x128xf32>
    %11 = arith.mulf %8, %10 : vector<2x128xf32>
    %12 = arith.addf %6, %11 : vector<2x128xf32>
    %13 = vector.extract_strided_slice %1 {offsets = [2, 0, 0], sizes = [1, 2, 128], strides = [1, 1, 1]} : vector<4x2x128xf32> to vector<1x2x128xf32>
    %14 = vector.shape_cast %13 : vector<1x2x128xf32> to vector<2x128xf32>
    %c0_6 = arith.constant 0 : index
    %c2 = arith.constant 2 : index
    %15 = memref.load %arg3[%c0_6, %c2] : memref<3x4xf32, #tpu.memory_space<smem>>
    %16 = vector.broadcast %15 : f32 to vector<2x128xf32>
    %17 = arith.mulf %14, %16 : vector<2x128xf32>
    %18 = arith.addf %12, %17 : vector<2x128xf32>
    %19 = vector.extract_strided_slice %1 {offsets = [3, 0, 0], sizes = [1, 2, 128], strides = [1, 1, 1]} : vector<4x2x128xf32> to vector<1x2x128xf32>
    %20 = vector.shape_cast %19 : vector<1x2x128xf32> to vector<2x128xf32>
    %c0_7 = arith.constant 0 : index
    %c3 = arith.constant 3 : index
    %21 = memref.load %arg3[%c0_7, %c3] : memref<3x4xf32, #tpu.memory_space<smem>>
    %22 = vector.broadcast %21 : f32 to vector<2x128xf32>
    %23 = arith.mulf %20, %22 : vector<2x128xf32>
    %24 = arith.addf %18, %23 : vector<2x128xf32>
    %c0_8 = arith.constant 0 : index
    %25 = memref.load %arg4[%c0_8] : memref<3xf32, #tpu.memory_space<smem>>
    %26 = vector.broadcast %25 : f32 to vector<2x128xf32>
    %27 = arith.addf %24, %26 : vector<2x128xf32>
    %cst = arith.constant 5.000000e-01 : f32
    %28 = vector.broadcast %cst : f32 to vector<2x128xf32>
    %29 = arith.mulf %28, %27 : vector<2x128xf32>
    %30 = math.tanh %29 : vector<2x128xf32>
    %cst_9 = arith.constant 5.000000e-01 : f32
    %31 = vector.broadcast %cst_9 : f32 to vector<2x128xf32>
    %32 = arith.mulf %31, %30 : vector<2x128xf32>
    %cst_10 = arith.constant 5.000000e-01 : f32
    %33 = vector.broadcast %cst_10 : f32 to vector<2x128xf32>
    %34 = arith.addf %32, %33 : vector<2x128xf32>
    %c0_11 = arith.constant 0 : index
    %c0_12 = arith.constant 0 : index
    %c0_13 = arith.constant 0 : index
    %c0_14 = arith.constant 0 : index
    %35 = vector.load %arg5[%c0_11, %c0_12, %c0_13, %c0_14] : memref<1x3x2x128xf32, #tpu.memory_space<vmem>>, vector<1x1x2x128xf32>
    %36 = vector.shape_cast %35 : vector<1x1x2x128xf32> to vector<2x128xf32>
    %37 = vector.shape_cast %34 : vector<2x128xf32> to vector<1x1x2x128xf32>
    tpu.vector_store %arg5[%c0_11, %c0_12, %c0_13, %c0_14], %37 {strides = array<i32>} : memref<1x3x2x128xf32, #tpu.memory_space<vmem>>, vector<1x1x2x128xf32>,
    %38 = vector.extract_strided_slice %1 {offsets = [0, 0, 0], sizes = [1, 2, 128], strides = [1, 1, 1]} : vector<4x2x128xf32> to vector<1x2x128xf32>
    %39 = vector.shape_cast %38 : vector<1x2x128xf32> to vector<2x128xf32>
    %c1_15 = arith.constant 1 : index
    %c0_16 = arith.constant 0 : index
    %40 = memref.load %arg3[%c1_15, %c0_16] : memref<3x4xf32, #tpu.memory_space<smem>>
    %41 = vector.broadcast %40 : f32 to vector<2x128xf32>
    %42 = arith.mulf %39, %41 : vector<2x128xf32>
    %43 = vector.extract_strided_slice %1 {offsets = [1, 0, 0], sizes = [1, 2, 128], strides = [1, 1, 1]} : vector<4x2x128xf32> to vector<1x2x128xf32>
    %44 = vector.shape_cast %43 : vector<1x2x128xf32> to vector<2x128xf32>
    %c1_17 = arith.constant 1 : index
    %c1_18 = arith.constant 1 : index
    %45 = memref.load %arg3[%c1_17, %c1_18] : memref<3x4xf32, #tpu.memory_space<smem>>
    %46 = vector.broadcast %45 : f32 to vector<2x128xf32>
    %47 = arith.mulf %44, %46 : vector<2x128xf32>
    %48 = arith.addf %42, %47 : vector<2x128xf32>
    %49 = vector.extract_strided_slice %1 {offsets = [2, 0, 0], sizes = [1, 2, 128], strides = [1, 1, 1]} : vector<4x2x128xf32> to vector<1x2x128xf32>
    %50 = vector.shape_cast %49 : vector<1x2x128xf32> to vector<2x128xf32>
    %c1_19 = arith.constant 1 : index
    %c2_20 = arith.constant 2 : index
    %51 = memref.load %arg3[%c1_19, %c2_20] : memref<3x4xf32, #tpu.memory_space<smem>>
    %52 = vector.broadcast %51 : f32 to vector<2x128xf32>
    %53 = arith.mulf %50, %52 : vector<2x128xf32>
    %54 = arith.addf %48, %53 : vector<2x128xf32>
    %55 = vector.extract_strided_slice %1 {offsets = [3, 0, 0], sizes = [1, 2, 128], strides = [1, 1, 1]} : vector<4x2x128xf32> to vector<1x2x128xf32>
    %56 = vector.shape_cast %55 : vector<1x2x128xf32> to vector<2x128xf32>
    %c1_21 = arith.constant 1 : index
    %c3_22 = arith.constant 3 : index
    %57 = memref.load %arg3[%c1_21, %c3_22] : memref<3x4xf32, #tpu.memory_space<smem>>
    %58 = vector.broadcast %57 : f32 to vector<2x128xf32>
    %59 = arith.mulf %56, %58 : vector<2x128xf32>
    %60 = arith.addf %54, %59 : vector<2x128xf32>
    %c1_23 = arith.constant 1 : index
    %61 = memref.load %arg4[%c1_23] : memref<3xf32, #tpu.memory_space<smem>>
    %62 = vector.broadcast %61 : f32 to vector<2x128xf32>
    %63 = arith.addf %60, %62 : vector<2x128xf32>
    %cst_24 = arith.constant 5.000000e-01 : f32
    %64 = vector.broadcast %cst_24 : f32 to vector<2x128xf32>
    %65 = arith.mulf %64, %63 : vector<2x128xf32>
    %66 = math.tanh %65 : vector<2x128xf32>
    %cst_25 = arith.constant 5.000000e-01 : f32
    %67 = vector.broadcast %cst_25 : f32 to vector<2x128xf32>
    %68 = arith.mulf %67, %66 : vector<2x128xf32>
    %cst_26 = arith.constant 5.000000e-01 : f32
    %69 = vector.broadcast %cst_26 : f32 to vector<2x128xf32>
    %70 = arith.addf %68, %69 : vector<2x128xf32>
    %c0_27 = arith.constant 0 : index
    %c1_28 = arith.constant 1 : index
    %c0_29 = arith.constant 0 : index
    %c0_30 = arith.constant 0 : index
    %71 = vector.load %arg5[%c0_27, %c1_28, %c0_29, %c0_30] : memref<1x3x2x128xf32, #tpu.memory_space<vmem>>, vector<1x1x2x128xf32>
    %72 = vector.shape_cast %71 : vector<1x1x2x128xf32> to vector<2x128xf32>
    %73 = vector.shape_cast %70 : vector<2x128xf32> to vector<1x1x2x128xf32>
    tpu.vector_store %arg5[%c0_27, %c1_28, %c0_29, %c0_30], %73 {strides = array<i32>} : memref<1x3x2x128xf32, #tpu.memory_space<vmem>>, vector<1x1x2x128xf32>,
    %74 = vector.extract_strided_slice %1 {offsets = [0, 0, 0], sizes = [1, 2, 128], strides = [1, 1, 1]} : vector<4x2x128xf32> to vector<1x2x128xf32>
    %75 = vector.shape_cast %74 : vector<1x2x128xf32> to vector<2x128xf32>
    %c2_31 = arith.constant 2 : index
    %c0_32 = arith.constant 0 : index
    %76 = memref.load %arg3[%c2_31, %c0_32] : memref<3x4xf32, #tpu.memory_space<smem>>
    %77 = vector.broadcast %76 : f32 to vector<2x128xf32>
    %78 = arith.mulf %75, %77 : vector<2x128xf32>
    %79 = vector.extract_strided_slice %1 {offsets = [1, 0, 0], sizes = [1, 2, 128], strides = [1, 1, 1]} : vector<4x2x128xf32> to vector<1x2x128xf32>
    %80 = vector.shape_cast %79 : vector<1x2x128xf32> to vector<2x128xf32>
    %c2_33 = arith.constant 2 : index
    %c1_34 = arith.constant 1 : index
    %81 = memref.load %arg3[%c2_33, %c1_34] : memref<3x4xf32, #tpu.memory_space<smem>>
    %82 = vector.broadcast %81 : f32 to vector<2x128xf32>
    %83 = arith.mulf %80, %82 : vector<2x128xf32>
    %84 = arith.addf %78, %83 : vector<2x128xf32>
    %85 = vector.extract_strided_slice %1 {offsets = [2, 0, 0], sizes = [1, 2, 128], strides = [1, 1, 1]} : vector<4x2x128xf32> to vector<1x2x128xf32>
    %86 = vector.shape_cast %85 : vector<1x2x128xf32> to vector<2x128xf32>
    %c2_35 = arith.constant 2 : index
    %c2_36 = arith.constant 2 : index
    %87 = memref.load %arg3[%c2_35, %c2_36] : memref<3x4xf32, #tpu.memory_space<smem>>
    %88 = vector.broadcast %87 : f32 to vector<2x128xf32>
    %89 = arith.mulf %86, %88 : vector<2x128xf32>
    %90 = arith.addf %84, %89 : vector<2x128xf32>
    %91 = vector.extract_strided_slice %1 {offsets = [3, 0, 0], sizes = [1, 2, 128], strides = [1, 1, 1]} : vector<4x2x128xf32> to vector<1x2x128xf32>
    %92 = vector.shape_cast %91 : vector<1x2x128xf32> to vector<2x128xf32>
    %c2_37 = arith.constant 2 : index
    %c3_38 = arith.constant 3 : index
    %93 = memref.load %arg3[%c2_37, %c3_38] : memref<3x4xf32, #tpu.memory_space<smem>>
    %94 = vector.broadcast %93 : f32 to vector<2x128xf32>
    %95 = arith.mulf %92, %94 : vector<2x128xf32>
    %96 = arith.addf %90, %95 : vector<2x128xf32>
    %c2_39 = arith.constant 2 : index
    %97 = memref.load %arg4[%c2_39] : memref<3xf32, #tpu.memory_space<smem>>
    %98 = vector.broadcast %97 : f32 to vector<2x128xf32>
    %99 = arith.addf %96, %98 : vector<2x128xf32>
    %cst_40 = arith.constant 5.000000e-01 : f32
    %100 = vector.broadcast %cst_40 : f32 to vector<2x128xf32>
    %101 = arith.mulf %100, %99 : vector<2x128xf32>
    %102 = math.tanh %101 : vector<2x128xf32>
    %cst_41 = arith.constant 5.000000e-01 : f32
    %103 = vector.broadcast %cst_41 : f32 to vector<2x128xf32>
    %104 = arith.mulf %103, %102 : vector<2x128xf32>
    %cst_42 = arith.constant 5.000000e-01 : f32
    %105 = vector.broadcast %cst_42 : f32 to vector<2x128xf32>
    %106 = arith.addf %104, %105 : vector<2x128xf32>
    %c0_43 = arith.constant 0 : index
    %c2_44 = arith.constant 2 : index
    %c0_45 = arith.constant 0 : index
    %c0_46 = arith.constant 0 : index
    %107 = vector.load %arg5[%c0_43, %c2_44, %c0_45, %c0_46] : memref<1x3x2x128xf32, #tpu.memory_space<vmem>>, vector<1x1x2x128xf32>
    %108 = vector.shape_cast %107 : vector<1x1x2x128xf32> to vector<2x128xf32>
    %109 = vector.shape_cast %106 : vector<2x128xf32> to vector<1x1x2x128xf32>
    tpu.vector_store %arg5[%c0_43, %c2_44, %c0_45, %c0_46], %109 {strides = array<i32>} : memref<1x3x2x128xf32, #tpu.memory_space<vmem>>, vector<1x1x2x128xf32>,
    return
  }
  func.func @transform_0(%arg0: i32, %arg1: i32) -> (i32, i32, i32, i32) {
    %c0_i32 = arith.constant 0 : i32
    %c0_i32_0 = arith.constant 0 : i32
    %c0_i32_1 = arith.constant 0 : i32
    return %arg0, %c0_i32, %arg1, %c0_i32_0 : i32, i32, i32, i32
  }
  func.func @transform_1(%arg0: i32, %arg1: i32) -> (i32, i32) {
    %c0_i32 = arith.constant 0 : i32
    %c0_i32_0 = arith.constant 0 : i32
    %c0_i32_1 = arith.constant 0 : i32
    return %c0_i32, %c0_i32_0 : i32, i32
  }
  func.func @transform_2(%arg0: i32, %arg1: i32) -> i32 {
    %c0_i32 = arith.constant 0 : i32
    %c0_i32_0 = arith.constant 0 : i32
    return %c0_i32 : i32
  }
  func.func @transform_3(%arg0: i32, %arg1: i32) -> (i32, i32, i32, i32) {
    %c0_i32 = arith.constant 0 : i32
    %c0_i32_0 = arith.constant 0 : i32
    %c0_i32_1 = arith.constant 0 : i32
    return %arg0, %c0_i32, %arg1, %c0_i32_0 : i32, i32, i32, i32
  }
}

</mosaic_0001>

<llo_original>
// kernel: tpu_custom_call.1
$region0: #{tpu_custom_call.1}
  #allocation0 [shape = 'u32[]', space=smem, size = 0x4, offset = 0x4, fixed_abs, tag = 'smem constant byte address 0x4 - core index']
  #allocation1 [shape = 'u32[72,128]{1,0:T(1,128)}', space=vmem, size = 0x9000, scoped, tag = 'internal scratch']
  %s0 = inlined_call_operand.hbm [shape: f32[2,4,2,128], index: 0, kind: input, shape index: {}]
  %s1 = inlined_call_operand.hbm [shape: f32[3,4], index: 1, kind: input, shape index: {}]
  %s2 = inlined_call_operand.vmem [shape: f32[3], index: 2, kind: input, shape index: {}]
  %s3 = inlined_call_operand.hbm [shape: f32[2,3,2,128], index: 3, kind: output, shape index: {}]
  %s4 = sld [smem:[#allocation0]]
  $region57: #{tpu_custom_call.1} parent=0
    _
  %s6 = ssub.s32 1, %s4
  %s7 = scalar_select 0, %s6, %s4
  $region1: #{tpu_custom_call.1} parent=0
    #allocation2 [shape = 'u8[8192]{0}', space=vmem, size = 0x2000, scoped, tag = 'input window, operand 0']
    #allocation3 [shape = 's32[2]{0}', space=sflag, size = 0x8, scoped, tag = 'scoped memory for tpu_custom_call.1']
    #allocation4 [shape = 's32[2]{0}', space=sflag, size = 0x8, scoped, tag = 'scoped memory for tpu_custom_call.1']
    #allocation5 [shape = 's32[2]{0}', space=sflag, size = 0x8, scoped, tag = 'scoped memory for tpu_custom_call.1']
    #allocation6 [shape = 's32[2]{0}', space=sflag, size = 0x8, scoped, tag = 'scoped memory for tpu_custom_call.1']
    #allocation7 [shape = 'u8[2048]{0}', space=smem, size = 0x800, scoped, tag = 'input window, operand 1, single buffered']
    #allocation8 [shape = 'u8[512]{0}', space=smem, size = 0x200, scoped, tag = 'input window, operand 2, single buffered']
    #allocation9 [shape = 'u8[6144]{0}', space=vmem, size = 0x1800, scoped, tag = 'output window, operand 0']
    %8 = vsyncpa [#allocation3], 0
    %s9 = scalar_lea.sflag [#allocation3], 1
    %10 = vsyncpa %s9, 0
    %11 = vsyncpa [#allocation5], 0
    %12 = vsyncpa [#allocation6], 0
    %13 = vsyncpa [#allocation4], 0
    %s14 = scalar_lea.sflag [#allocation4], 1
    %15 = vsyncpa %s14, 0
    loop: start=0, step=1, limit=4
    $region2: #{tpu_custom_call.1} parent=1 // loop_pre_header
      _
    $region3: #{tpu_custom_call.1} parent=1 // loop_header
      %s17 = sphi 0, %s21
      %p18 = scmp.ge.s32.totalorder %s17, 4
      %s24 = sphi 0, %s36
      %s25 = sphi 0, %s32
      %s26 = sphi 0, %s24
      %s27 = sphi 0, %s25
      %s28 = sphi 0, %s26
      %s29 = sphi 0, %s27
      %s41 = sphi 0, %s43
      %s44 = sphi 0, %s41
      %s45 = sphi 0, %s44
      %s61 = sphi 0, %s45
      %s65 = sphi 0, %s65
      %s67 = sphi 0, %s65
      %s68 = sphi 0, %s67
      %s82 = sphi 0, %s68
      %s86 = sphi 0, %s86
      %s88 = sphi 0, %s86
      %s89 = sphi 0, %s88
      %s103 = sphi 0, %s89
      %s111 = sphi 0, %s113
      %s114 = sphi 0, %s111
      %s115 = sphi 0, %s114
      %s131 = sphi 0, %s115
    $region4: #{tpu_custom_call.1} parent=1 // loop_header_branch
      %20 = sbr.rel (%p18) target = $region8
    $region5: #{tpu_custom_call.1} parent=1 // loop_body
      %s22 = ssub.s32 %s17, 1
      %s23 = ssub.s32 %s17, 2
      %s30 = sadd.s32 1, %s25
      %p31 = scmp.ge.s32.totalorder %s30, 1
      %s32 = scalar_select %p31, 0, %s30
      %s33 = sadd.s32 1, %s24
      %s34 = scalar_select %p31, %s33, %s24
      %p35 = scmp.ge.s32.totalorder %s34, 2
      %s36 = scalar_select %p35, 0, %s34
      %s37 = ssub.s32 %s24, %s36
      %s38 = ssub.s32 %s25, %s32
      %s39 = sor.u32 %s37, %s38
      %p40 = scmp.eq.s32.totalorder %s39, 0
      %s42 = sadd.s32 %s41, 1
      %s43 = scalar_select %p40, %s41, %s42
      %p46 = pneg %p40
      %p47 = scmp.eq.s32.totalorder %s17, 1
      %p48 = por %p46, %p47
      %p49 = scmp.ne.s32.totalorder %s41, %s44
      %p50 = scmp.eq.s32.totalorder %s17, 0
      %p51 = por %p49, %p50
      %p52 = scmp.ne.s32.totalorder %s41, %s44
      %p53 = scmp.eq.s32.totalorder %s22, 1
      %p54 = por %p52, %p53
      %p55 = scmp.ne.s32.totalorder %s44, %s45
      %p56 = scmp.eq.s32.totalorder %s22, 0
      %p57 = por %p55, %p56
      %p58 = scmp.ne.s32.totalorder %s44, %s45
      %p59 = scmp.eq.s32.totalorder %s23, 1
      %p60 = por %p58, %p59
      %p62 = scmp.ne.s32.totalorder %s45, %s61
      %p63 = scmp.eq.s32.totalorder %s23, 0
      %p64 = por %p62, %p63
      %s66 = sadd.s32 %s65, 1
      %p69 = scmp.eq.s32.totalorder %s17, 1
      %p70 = scmp.ne.s32.totalorder %s65, %s67
      %p71 = scmp.eq.s32.totalorder %s17, 0
      %p72 = por %p70, %p71
      %p73 = scmp.ne.s32.totalorder %s65, %s67
      %p74 = scmp.eq.s32.totalorder %s22, 1
      %p75 = por %p73, %p74
      %p76 = scmp.ne.s32.totalorder %s67, %s68
      %p77 = scmp.eq.s32.totalorder %s22, 0
      %p78 = por %p76, %p77
      %p79 = scmp.ne.s32.totalorder %s67, %s68
      %p80 = scmp.eq.s32.totalorder %s23, 1
      %p81 = por %p79, %p80
      %p83 = scmp.ne.s32.totalorder %s68, %s82
      %p84 = scmp.eq.s32.totalorder %s23, 0
      %p85 = por %p83, %p84
      %s87 = sadd.s32 %s86, 1
      %p90 = scmp.eq.s32.totalorder %s17, 1
      %p91 = scmp.ne.s32.totalorder %s86, %s88
      %p92 = scmp.eq.s32.totalorder %s17, 0
      %p93 = por %p91, %p92
      %p94 = scmp.ne.s32.totalorder %s86, %s88
      %p95 = scmp.eq.s32.totalorder %s22, 1
      %p96 = por %p94, %p95
      %p97 = scmp.ne.s32.totalorder %s88, %s89
      %p98 = scmp.eq.s32.totalorder %s22, 0
      %p99 = por %p97, %p98
      %p100 = scmp.ne.s32.totalorder %s88, %s89
      %p101 = scmp.eq.s32.totalorder %s23, 1
      %p102 = por %p100, %p101
      %p104 = scmp.ne.s32.totalorder %s89, %s103
      %p105 = scmp.eq.s32.totalorder %s23, 0
      %p106 = por %p104, %p105
      %s107 = ssub.s32 %s24, %s36
      %s108 = ssub.s32 %s25, %s32
      %s109 = sor.u32 %s107, %s108
      %p110 = scmp.eq.s32.totalorder %s109, 0
      %s112 = sadd.s32 %s111, 1
      %s113 = scalar_select %p110, %s111, %s112
      %p116 = pneg %p110
      %p117 = scmp.eq.s32.totalorder %s17, 1
      %p118 = por %p116, %p117
      %p119 = scmp.ne.s32.totalorder %s111, %s114
      %p120 = scmp.eq.s32.totalorder %s17, 0
      %p121 = por %p119, %p120
      %p122 = scmp.ne.s32.totalorder %s111, %s114
      %p123 = scmp.eq.s32.totalorder %s22, 1
      %p124 = por %p122, %p123
      %p125 = scmp.ne.s32.totalorder %s114, %s115
      %p126 = scmp.eq.s32.totalorder %s22, 0
      %p127 = por %p125, %p126
      %p128 = scmp.ne.s32.totalorder %s114, %s115
      %p129 = scmp.eq.s32.totalorder %s23, 1
      %p130 = por %p128, %p129
      %p132 = scmp.ne.s32.totalorder %s115, %s131
      %p133 = scmp.eq.s32.totalorder %s23, 0
      %p134 = por %p132, %p133
      %p135 = scmp.le.s32.totalorder 1, %s17
      %p136 = scmp.lt.s32.totalorder %s17, 3
      %p137 = pnand %p135, %p136
      %p138 = pneg %p137
      // Predicated region
      $region9: #{tpu_custom_call.1} parent=5 // pred_check
        _
      $region10: #{tpu_custom_call.1} parent=5 // pred_check_branch
        %140 = sbr.rel (%p137) target = $region12
      $region11: #{tpu_custom_call.1} parent=5 // pred_region
        %s141 = ssub.s32 %s17, 1
        // Predicated region
        $region13: #{tpu_custom_call.1} parent=11 // pred_check
          %p142 = pneg %p78
        $region14: #{tpu_custom_call.1} parent=11 // pred_check_branch
          %144 = sbr.rel (%p142) target = $region16
        $region15: #{tpu_custom_call.1} parent=11 // pred_region
          %146 = vsyncadd [#allocation5], 0
          %s148 = sshll.u32 %s1, 4
          %s149 = int_to_ptr.hbm [resolvable:$true] %s148
          %151 = dma.hbm_to_smem %s149, 64, [#allocation7], [#allocation5]
        $region16: #{tpu_custom_call.1} parent=11 // pred_fallthru
          _
        // Predicated region
        $region17: #{tpu_custom_call.1} parent=11 // pred_check
          %p152 = pneg %p99
        $region18: #{tpu_custom_call.1} parent=11 // pred_check_branch
          %154 = sbr.rel (%p152) target = $region20
        $region19: #{tpu_custom_call.1} parent=11 // pred_region
          %156 = vsyncadd [#allocation6], 0
          %s158 = sshll.u32 %s2, 4
          %s159 = int_to_ptr.vmem [resolvable:$true] %s158
          %161 = dma.vmem_to_smem %s159, 16, [#allocation8], [#allocation6]
        $region20: #{tpu_custom_call.1} parent=11 // pred_fallthru
          _
      $region12: #{tpu_custom_call.1} parent=5 // pred_fallthru
        _
      %p162 = scmp.lt.s32.totalorder %s17, 2
      // Predicated region
      $region21: #{tpu_custom_call.1} parent=5 // pred_check
        %p163 = pneg %p162
      $region22: #{tpu_custom_call.1} parent=5 // pred_check_branch
        %165 = sbr.rel (%p163) target = $region24
      $region23: #{tpu_custom_call.1} parent=5 // pred_region
        // Predicated region
        $region25: #{tpu_custom_call.1} parent=23 // pred_check
          %p166 = pneg %p51
        $region26: #{tpu_custom_call.1} parent=23 // pred_check_branch
          %168 = sbr.rel (%p166) target = $region28
        $region27: #{tpu_custom_call.1} parent=23 // pred_region
          %s169 = sand.u32 %s41, 1
          %s170 = scalar_lea.sflag [#allocation3], %s169
          %s171 = sand.u32 %s41, 1
          %s172 = smul.addr %s171, 8
          %s173 = scalar_lea.vmem [#allocation2], %s172
          %175 = vsyncadd %s170, 0
          %s176 = smul.addr %s24, 4
          %s177 = sadd.s32 %s25, %s176
          %s178 = smul.addr %s177, 2
          %s179 = scalar_lea.hbm %s0, %s178
          %s180 = sshll.u32 %s179, 4
          %s181 = int_to_ptr.hbm [resolvable:$true] %s180
          %s182 = sshll.u32 %s173, 4
          %s183 = int_to_ptr.vmem [resolvable:$true] %s182
          %188 = dma.hbm_to_vmem [thread:$0]  %s181, 128, %s183, %s170, 32, 32, 2
        $region28: #{tpu_custom_call.1} parent=23 // pred_fallthru
          _
      $region24: #{tpu_custom_call.1} parent=5 // pred_fallthru
        _
      %p189 = scmp.le.s32.totalorder 1, %s17
      %p190 = scmp.lt.s32.totalorder %s17, 3
      %p191 = pnand %p189, %p190
      %p192 = pneg %p191
      // Predicated region
      $region29: #{tpu_custom_call.1} parent=5 // pred_check
        _
      $region30: #{tpu_custom_call.1} parent=5 // pred_check_branch
        %194 = sbr.rel (%p191) target = $region32
      $region31: #{tpu_custom_call.1} parent=5 // pred_region
        %s195 = ssub.s32 %s17, 1
        %s196 = sand.u32 %s44, 1
        %s197 = scalar_lea.sflag [#allocation3], %s196
        %s198 = sand.u32 %s44, 1
        %s199 = smul.addr %s198, 8
        %s200 = scalar_lea.vmem [#allocation2], %s199
        // Predicated region
        $region33: #{tpu_custom_call.1} parent=31 // pred_check
          %p201 = pneg %p57
        $region34: #{tpu_custom_call.1} parent=31 // pred_check_branch
          %203 = sbr.rel (%p201) target = $region36
        $region35: #{tpu_custom_call.1} parent=31 // pred_region
          %205 = dma.done %s197, 128
        $region36: #{tpu_custom_call.1} parent=31 // pred_fallthru
          _
        // Predicated region
        $region37: #{tpu_custom_call.1} parent=31 // pred_check
          %p206 = pneg %p78
        $region38: #{tpu_custom_call.1} parent=31 // pred_check_branch
          %208 = sbr.rel (%p206) target = $region40
        $region39: #{tpu_custom_call.1} parent=31 // pred_region
          %210 = dma.done [#allocation5], 64
        $region40: #{tpu_custom_call.1} parent=31 // pred_fallthru
          _
        // Predicated region
        $region41: #{tpu_custom_call.1} parent=31 // pred_check
          %p211 = pneg %p99
        $region42: #{tpu_custom_call.1} parent=31 // pred_check_branch
          %213 = sbr.rel (%p211) target = $region44
        $region43: #{tpu_custom_call.1} parent=31 // pred_region
          %215 = dma.done [#allocation6], 16
        $region44: #{tpu_custom_call.1} parent=31 // pred_fallthru
          _
        %216 = sfence
        %s217 = sand.u32 %s44, 1
        %s218 = scalar_lea.sflag [#allocation3], %s217
        %s219 = sand.u32 %s44, 1
        %s220 = smul.addr %s219, 8
        %s221 = scalar_lea.vmem [#allocation2], %s220
        %p222 = pneg %p57
        %p223 = pneg %p54
        %p224 = pneg %p78
        %p225 = pneg %p75
        %p226 = pneg %p99
        %p227 = pneg %p96
        %p228 = pneg %p127
        %p229 = pneg %p124
        %s230 = sand.u32 %s114, 1
        %s231 = scalar_lea.sflag [#allocation4], %s230
        %s232 = sand.u32 %s114, 1
        %s233 = smul.addr %s232, 6
        %s234 = scalar_lea.vmem [#allocation9], %s233
        %v235 = vld [vmem:[%s200] sm:$0x3]
        %v236 = vld [vmem:[%s200 + $0x2] sm:$0x3]
        %v237 = vld [vmem:[%s200 + $0x4] sm:$0x3]
        %v238 = vld [vmem:[%s200 + $0x6] sm:$0x3]
        %s239 = sld [smem:[#allocation7]]
        %v240 = vstv %s239
        %v241 = vmul.f32 %v235, %v240
        %s242 = sld [smem:[#allocation7 + $0x1]]
        %v243 = vstv %s242
        %v244 = vmul.f32 %v236, %v243
        %v245 = vadd.f32 %v241, %v244
        %s246 = sld [smem:[#allocation7 + $0x2]]
        %v247 = vstv %s246
        %v248 = vmul.f32 %v237, %v247
        %v249 = vadd.f32 %v245, %v248
        %s250 = sld [smem:[#allocation7 + $0x3]]
        %v251 = vstv %s250
        %v252 = vmul.f32 %v238, %v251
        %v253 = vadd.f32 %v249, %v252
        %s254 = sld [smem:[#allocation8]]
        %v255 = vstv %s254
        %v256 = vadd.f32 %v253, %v255
        %v257 = vmul.f32 %v256, 0.5
        %v258 = vtanh.pop %v257
        %v259 = vmul.f32 %v258, 0.5
        %v260 = vadd.f32 %v259, 0.5
        %261 = vst [vmem:[%s234] sm:$0x3] %v260
        %s262 = sld [smem:[#allocation7 + $0x80]]
        %v263 = vstv %s262
        %v264 = vmul.f32 %v235, %v263
        %s265 = sld [smem:[#allocation7 + $0x81]]
        %v266 = vstv %s265
        %v267 = vmul.f32 %v236, %v266
        %v268 = vadd.f32 %v264, %v267
        %s269 = sld [smem:[#allocation7 + $0x82]]
        %v270 = vstv %s269
        %v271 = vmul.f32 %v237, %v270
        %v272 = vadd.f32 %v268, %v271
        %s273 = sld [smem:[#allocation7 + $0x83]]
        %v274 = vstv %s273
        %v275 = vmul.f32 %v238, %v274
        %v276 = vadd.f32 %v272, %v275
        %s277 = sld [smem:[#allocation8 + $0x1]]
        %v278 = vstv %s277
        %v279 = vadd.f32 %v276, %v278
        %v280 = vmul.f32 %v279, 0.5
        %v281 = vtanh.pop %v280
        %v282 = vmul.f32 %v281, 0.5
        %v283 = vadd.f32 %v282, 0.5
        %s284 = scalar_lea.vmem %s234, 2 [#allocation9]
        %285 = vst [vmem:[%s284] sm:$0x3] %v283
        %s286 = sld [smem:[#allocation7 + $0x100]]
        %v287 = vstv %s286
        %v288 = vmul.f32 %v235, %v287
        %s289 = sld [smem:[#allocation7 + $0x101]]
        %v290 = vstv %s289
        %v291 = vmul.f32 %v236, %v290
        %v292 = vadd.f32 %v288, %v291
        %s293 = sld [smem:[#allocation7 + $0x102]]
        %v294 = vstv %s293
        %v295 = vmul.f32 %v237, %v294
        %v296 = vadd.f32 %v292, %v295
        %s297 = sld [smem:[#allocation7 + $0x103]]
        %v298 = vstv %s297
        %v299 = vmul.f32 %v238, %v298
        %v300 = vadd.f32 %v296, %v299
        %s301 = sld [smem:[#allocation8 + $0x2]]
        %v302 = vstv %s301
        %v303 = vadd.f32 %v300, %v302
        %v304 = vmul.f32 %v303, 0.5
        %v305 = vtanh.pop %v304
        %v306 = vmul.f32 %v305, 0.5
        %v307 = vadd.f32 %v306, 0.5
        %s308 = scalar_lea.vmem %s234, 4 [#allocation9]
        %309 = vst [vmem:[%s308] sm:$0x3] %v307
        %s310 = sand.u32 %s114, 1
        %s311 = scalar_lea.sflag [#allocation4], %s310
        %s312 = sand.u32 %s114, 1
        %s313 = smul.addr %s312, 6
        %s314 = scalar_lea.vmem [#allocation9], %s313
        // Predicated region
        $region45: #{tpu_custom_call.1} parent=31 // pred_check
          %p315 = pneg %p124
        $region46: #{tpu_custom_call.1} parent=31 // pred_check_branch
          %317 = sbr.rel (%p315) target = $region48
        $region47: #{tpu_custom_call.1} parent=31 // pred_region
          %319 = vsyncadd %s311, 0
          %s320 = smul.addr %s26, 3
          %s321 = sadd.s32 %s27, %s320
          %s322 = smul.addr %s321, 2
          %s323 = scalar_lea.hbm %s3, %s322
          %s324 = sshll.u32 %s314, 4
          %s325 = int_to_ptr.vmem [resolvable:$true] %s324
          %s326 = sshll.u32 %s323, 4
          %s327 = int_to_ptr.hbm [resolvable:$true] %s326
          %332 = dma.vmem_to_hbm [thread:$0]  %s325, 96, %s327, %s311, 32, 32, 2
        $region48: #{tpu_custom_call.1} parent=31 // pred_fallthru
          _
      $region32: #{tpu_custom_call.1} parent=5 // pred_fallthru
        _
      %p333 = scmp.le.s32.totalorder 2, %s17
      // Predicated region
      $region49: #{tpu_custom_call.1} parent=5 // pred_check
        %p334 = pneg %p333
      $region50: #{tpu_custom_call.1} parent=5 // pred_check_branch
        %336 = sbr.rel (%p334) target = $region52
      $region51: #{tpu_custom_call.1} parent=5 // pred_region
        %s337 = ssub.s32 %s17, 2
        // Predicated region
        $region53: #{tpu_custom_call.1} parent=51 // pred_check
          %p338 = pneg %p130
        $region54: #{tpu_custom_call.1} parent=51 // pred_check_branch
          %340 = sbr.rel (%p338) target = $region56
        $region55: #{tpu_custom_call.1} parent=51 // pred_region
          %s341 = sand.u32 %s115, 1
          %s342 = scalar_lea.sflag [#allocation4], %s341
          %s343 = sand.u32 %s115, 1
          %s344 = smul.addr %s343, 6
          %s345 = scalar_lea.vmem [#allocation9], %s344
          %347 = dma.done %s342, 96
        $region56: #{tpu_custom_call.1} parent=51 // pred_fallthru
          _
      $region52: #{tpu_custom_call.1} parent=5 // pred_fallthru
        _
    $region6: #{tpu_custom_call.1} parent=1 // loop_footer
      %s21 = sadd.s32 1, %s17
    $region7: #{tpu_custom_call.1} parent=1 // loop_footer_branch
      %16 = sbr.rel target = $region3
    $region8: #{tpu_custom_call.1} parent=1 // loop_exit
      _
    %348 = vsyncpa [#allocation3], 1
    %s349 = scalar_lea.sflag [#allocation3], 1
    %350 = vsyncpa %s349, 1
    %351 = vsyncpa [#allocation4], 1
    %s352 = scalar_lea.sflag [#allocation4], 1
    %353 = vsyncpa %s352, 1
    %354 = vsyncpa [#allocation5], 1
    %s355 = scalar_lea.sflag [#allocation5], 1
    %356 = vsyncpa %s355, 1
    %357 = vsyncpa [#allocation6], 1
    %s358 = scalar_lea.sflag [#allocation6], 1
    %359 = vsyncpa %s358, 1

</llo_original>
